<compile_context>
chip_gen: v6e
topology: v6e:2x2x1
jax: 0.10.0
libtpu: 0.0.40
codegen_flags: <defaults>
</compile_context>

<pallas_src>
import jax
import jax.numpy as jnp
from jax import lax
from jax.experimental import pallas as pl
from jax.experimental.pallas import tpu as pltpu

LANE = 128
SUBLANE = 8


def _round_up(x, m):
    return ((x + m - 1) // m) * m


def policy_kernel(x_ref, w1_ref, b1_ref, w2_ref, b2_ref, wh_ref, bh_ref,
                  mask_ref, out_ref):
    """Feature-major MLP on one batch tile.

    x_ref   : [tb, obs]        batch tile as stored in HBM (feature-minor)
    w*_ref  : transposed weights W^T [out_feat, in_feat] (resident)
    b*_ref  : bias columns [out_feat, 1]                 (resident)
    mask_ref: [out_rows, 1] f32, 1.0 on mean rows, 0.0 on std/pad rows
    out_ref : [out_rows, tb]   rows [0,A)=mean, [A,2A)=std, rest pad
    """
    x = x_ref[...]                                        # [tb, obs] f32

    # Layer 1: contract the obs dim of both operands -> a1^T [h1, tb].
    # (Same transposed-rhs matmul pattern as q @ k.T in attention kernels.)
    z1 = lax.dot_general(w1_ref[...], x, (((1,), (1,)), ((), ())),
                         preferred_element_type=jnp.float32) + b1_ref[...]
    a1 = jnp.tanh(z1)                                     # [h1, tb]

    # Layer 2: standard matmul, stays feature-major.
    z2 = jnp.dot(w2_ref[...], a1,
                 preferred_element_type=jnp.float32) + b2_ref[...]
    a2 = jnp.tanh(z2)                                     # [h2, tb]

    # Fused mean/std head: one matmul -> z^T [out_rows, tb].
    z = jnp.dot(wh_ref[...], a2,
                preferred_element_type=jnp.float32) + bh_ref[...]

    # Numerically stable softplus: max(z,0) + log1p(exp(-|z|)).
    sp = jnp.maximum(z, 0.0) + jnp.log1p(jnp.exp(-jnp.abs(z)))

    # Mean rows pass through, std/pad rows get softplus. Mask is a tiny
    # resident column broadcast along lanes (no per-step iota).
    m = mask_ref[...]                                     # [out_rows, 1]
    out_ref[...] = m * z + (1.0 - m) * sp


def pack_params(params):
    """Re-layout the 8 weight/bias tensors into the feature-major form (once)."""
    w1, b1 = params["w1"], jnp.reshape(params["b1"], (-1,))
    w2, b2 = params["w2"], jnp.reshape(params["b2"], (-1,))
    wm, bm = params["wm"], jnp.reshape(params["bm"], (-1,))
    ws, bs = params["ws"], jnp.reshape(params["bs"], (-1,))

    obs_dims, h1 = w1.shape
    h2 = w2.shape[1]
    a_dims = wm.shape[1]
    out_rows = _round_up(2 * a_dims, SUBLANE)
    f32 = jnp.float32

    w1T = w1.T.astype(f32)                      # [h1, obs]
    b1c = b1.astype(f32).reshape(h1, 1)
    w2T = w2.T.astype(f32)                      # [h2, h1]
    b2c = b2.astype(f32).reshape(h2, 1)

    # Fused head: rows [0,A) = Wm^T, rows [A,2A) = Ws^T, rest zero.
    whT = jnp.zeros((out_rows, h2), f32)
    whT = whT.at[:a_dims].set(wm.T.astype(f32))
    whT = whT.at[a_dims:2 * a_dims].set(ws.T.astype(f32))
    bhc = jnp.zeros((out_rows, 1), f32)
    bhc = bhc.at[:a_dims, 0].set(bm.astype(f32))
    bhc = bhc.at[a_dims:2 * a_dims, 0].set(bs.astype(f32))

    maskc = (jnp.arange(out_rows) < a_dims).astype(f32).reshape(out_rows, 1)

    packed = dict(w1T=w1T, b1c=b1c, w2T=w2T, b2c=b2c, whT=whT, bhc=bhc,
                  maskc=maskc)
    meta = dict(obs_dims=obs_dims, h1=h1, h2=h2, action_dims=a_dims,
                out_rows=out_rows)
    return packed, meta


def _pick_batch_tile(batch):
    """Generation-aware batch tile (lane width of the transposed layout).

    Per-step VMEM ~= tb KiB (x tile lane-padded to 128, double buffered) plus
    a 32*tb-byte output block, so tb=4096 is ~4.5 MiB: well inside the scoped
    defaults of v5e (16 MiB, raised to 32 below), v6e (32 MiB) and v7x
    (32 of 64 MiB/TC).  For large batches keep >= 2 grid steps so
    dimension_semantics=("parallel",) can shard across the two v7x cores.
    """
    b = _round_up(max(batch, 1), LANE)
    if b <= 2048:
        return b                                  # one step, overhead negligible
    return min(4096, _round_up(pl.cdiv(b, 2), LANE))


def policy_network_forward(x, packed, meta, *, batch_tile=None):
    """x: [B, obs_dims] -> (mean [B, A], std [B, A])."""
    B, obs_dims = x.shape
    assert obs_dims == meta["obs_dims"]
    a_dims = meta["action_dims"]
    out_rows = meta["out_rows"]

    tb = _pick_batch_tile(B) if batch_tile is None else _round_up(batch_tile, LANE)
    b_pad = _round_up(B, tb)
    xp = x.astype(jnp.float32)
    if b_pad != B:
        xp = jnp.pad(xp, ((0, b_pad - B), (0, 0)))

    grid = (b_pad // tb,)

    w1T, b1c = packed["w1T"], packed["b1c"]
    w2T, b2c = packed["w2T"], packed["b2c"]
    whT, bhc, maskc = packed["whT"], packed["bhc"], packed["maskc"]

    def resident(shape):
        # Full-array block, constant index -> fetched once, stays in VMEM.
        return pl.BlockSpec(shape, lambda i: (0, 0))

    out = pl.pallas_call(
        policy_kernel,
        out_shape=jax.ShapeDtypeStruct((out_rows, b_pad), jnp.float32),
        grid=grid,
        in_specs=[
            pl.BlockSpec((tb, obs_dims), lambda i: (i, 0)),   # x batch tile
            resident(w1T.shape), resident(b1c.shape),
            resident(w2T.shape), resident(b2c.shape),
            resident(whT.shape), resident(bhc.shape),
            resident(maskc.shape),
        ],
        out_specs=pl.BlockSpec((out_rows, tb), lambda i: (0, i)),
        compiler_params=pltpu.CompilerParams(
            dimension_semantics=("parallel",),
            vmem_limit_bytes=32 * 1024 * 1024),
    )(xp, w1T, b1c, w2T, b2c, whT, bhc, maskc)

    mean = out[:a_dims, :B].T
    std = out[a_dims:2 * a_dims, :B].T
    return mean, std


def init_params(key, obs_dims, action_dims, h1=16, h2=32):
    """Deterministic init mimicking PyTorch Linear default (uniform +/- 1/sqrt(fan_in))."""
    def linear(k, fan_in, fan_out):
        kw, kb = jax.random.split(k)
        bound = 1.0 / jnp.sqrt(fan_in)
        w = jax.random.uniform(kw, (fan_in, fan_out), jnp.float32, -bound, bound)
        b = jax.random.uniform(kb, (1, fan_out), jnp.float32, -bound, bound)
        return w, b

    k1, k2, k3, k4 = jax.random.split(key, 4)
    w1, b1 = linear(k1, obs_dims, h1)
    w2, b2 = linear(k2, h1, h2)
    wm, bm = linear(k3, h2, action_dims)
    ws, bs = linear(k4, h2, action_dims)
    return dict(w1=w1, b1=b1, w2=w2, b2=b2, wm=wm, bm=bm, ws=ws, bs=bs)


def _reference(x, params):
    h1a = jnp.tanh(x @ params["w1"] + params["b1"])
    h2a = jnp.tanh(h1a @ params["w2"] + params["b2"])
    mean_ref = h2a @ params["wm"] + params["bm"]
    std_ref = jnp.log1p(jnp.exp(h2a @ params["ws"] + params["bs"]))
    return mean_ref, std_ref


if __name__ == "__main__":
    # parking-v0: obs dict of 3 spaces of dim 6 each -> 18; action space dim 2.
    obs_space_dims = 18
    action_space_dims = 2
    batch = 4

    key = jax.random.PRNGKey(0)
    kx, kp, kx2 = jax.random.split(key, 3)
    x = jax.random.normal(kx, (batch, obs_space_dims), jnp.float32)
    params = init_params(kp, obs_space_dims, action_space_dims)

    # Re-layout parameters once (outside the per-call path).
    packed, meta = pack_params(params)

    mean, std = policy_network_forward(x, packed, meta)
    jax.block_until_ready((mean, std))

    mean_ref, std_ref = _reference(x, params)
    assert mean.shape == (batch, action_space_dims), "mean shape mismatch"
    assert std.shape == (batch, action_space_dims), "std shape mismatch"
    assert jnp.allclose(mean, mean_ref, atol=1e-5), "mean mismatch"
    assert jnp.allclose(std, std_ref, atol=1e-5), "stddev mismatch"
    assert bool(jnp.all(std > 0)), "stddev must be positive"

    # Second check: non-multiple batch + forced small tile -> multi-step grid
    # (exercises the output index_map / batch-padding path at small size).
    batch2 = 300
    x2 = jax.random.normal(kx2, (batch2, obs_space_dims), jnp.float32)
    mean2, std2 = policy_network_forward(x2, packed, meta, batch_tile=128)
    jax.block_until_ready((mean2, std2))
    mean2_ref, std2_ref = _reference(x2, params)
    assert jnp.allclose(mean2, mean2_ref, atol=1e-5), "mean mismatch (grid>1)"
    assert jnp.allclose(std2, std2_ref, atol=1e-5), "stddev mismatch (grid>1)"

    print("KERNEL_OK")
</pallas_src>

<mosaic_0001>
module attributes {stable_mosaic.version = 11 : i64} {
  func.func @policy_kernel(%arg0: i32, %arg1: memref<128x18xf32, #tpu.memory_space<vmem>>, %arg2: memref<16x18xf32, #tpu.memory_space<vmem>>, %arg3: memref<16x1xf32, #tpu.memory_space<vmem>>, %arg4: memref<32x16xf32, #tpu.memory_space<vmem>>, %arg5: memref<32x1xf32, #tpu.memory_space<vmem>>, %arg6: memref<8x32xf32, #tpu.memory_space<vmem>>, %arg7: memref<8x1xf32, #tpu.memory_space<vmem>>, %arg8: memref<8x1xf32, #tpu.memory_space<vmem>>, %arg9: memref<8x128xf32, #tpu.memory_space<vmem>>) attributes {dimension_semantics = [#tpu.dimension_semantics<parallel>], iteration_bounds = array<i64: 1>, scalar_prefetch = 0 : i64, scratch_operands = 0 : i64, tpu.core_type = #tpu.core_type<tc>, window_params = [{transform_indices = @transform_0, window_bounds = array<i64: 128, 18>}, {pipeline_mode = #tpu.pipeline_mode<synchronous>, transform_indices = @transform_1, window_bounds = array<i64: 16, 18>}, {pipeline_mode = #tpu.pipeline_mode<synchronous>, transform_indices = @transform_2, window_bounds = array<i64: 16, 1>}, {pipeline_mode = #tpu.pipeline_mode<synchronous>, transform_indices = @transform_3, window_bounds = array<i64: 32, 16>}, {pipeline_mode = #tpu.pipeline_mode<synchronous>, transform_indices = @transform_4, window_bounds = array<i64: 32, 1>}, {pipeline_mode = #tpu.pipeline_mode<synchronous>, transform_indices = @transform_5, window_bounds = array<i64: 8, 32>}, {pipeline_mode = #tpu.pipeline_mode<synchronous>, transform_indices = @transform_6, window_bounds = array<i64: 8, 1>}, {pipeline_mode = #tpu.pipeline_mode<synchronous>, transform_indices = @transform_7, window_bounds = array<i64: 8, 1>}, {transform_indices = @transform_8, window_bounds = array<i64: 8, 128>}]} {
    %c0 = arith.constant 0 : index
    %c0_0 = arith.constant 0 : index
    %0 = vector.load %arg1[%c0, %c0_0] : memref<128x18xf32, #tpu.memory_space<vmem>>, vector<128x18xf32>
    %c0_1 = arith.constant 0 : index
    %c0_2 = arith.constant 0 : index
    %1 = vector.load %arg2[%c0_1, %c0_2] : memref<16x18xf32, #tpu.memory_space<vmem>>, vector<16x18xf32>
    %cst = arith.constant dense<0.000000e+00> : vector<16x128xf32>
    %2 = tpu.matmul %1, %0, %cst {dimension_numbers = #tpu.dot_dimension_numbers<[1], [1], [0], [0], [0, 0, 1, 0], [], []>} : vector<16x18xf32>, vector<128x18xf32>, vector<16x128xf32> -> vector<16x128xf32>
    %c0_3 = arith.constant 0 : index
    %c0_4 = arith.constant 0 : index
    %3 = vector.load %arg3[%c0_3, %c0_4] : memref<16x1xf32, #tpu.memory_space<vmem>>, vector<16x1xf32>
    %4 = vector.broadcast %3 : vector<16x1xf32> to vector<16x128xf32>
    %5 = arith.addf %2, %4 : vector<16x128xf32>
    %6 = math.tanh %5 : vector<16x128xf32>
    %c0_5 = arith.constant 0 : index
    %c0_6 = arith.constant 0 : index
    %7 = vector.load %arg4[%c0_5, %c0_6] : memref<32x16xf32, #tpu.memory_space<vmem>>, vector<32x16xf32>
    %cst_7 = arith.constant dense<0.000000e+00> : vector<32x128xf32>
    %8 = tpu.matmul %7, %6, %cst_7 {dimension_numbers = #tpu.dot_dimension_numbers<[1], [0], [0], [1], [0, 0, 1, 1], [], []>} : vector<32x16xf32>, vector<16x128xf32>, vector<32x128xf32> -> vector<32x128xf32>
    %c0_8 = arith.constant 0 : index
    %c0_9 = arith.constant 0 : index
    %9 = vector.load %arg5[%c0_8, %c0_9] : memref<32x1xf32, #tpu.memory_space<vmem>>, vector<32x1xf32>
    %10 = vector.broadcast %9 : vector<32x1xf32> to vector<32x128xf32>
    %11 = arith.addf %8, %10 : vector<32x128xf32>
    %12 = math.tanh %11 : vector<32x128xf32>
    %c0_10 = arith.constant 0 : index
    %c0_11 = arith.constant 0 : index
    %13 = vector.load %arg6[%c0_10, %c0_11] : memref<8x32xf32, #tpu.memory_space<vmem>>, vector<8x32xf32>
    %cst_12 = arith.constant dense<0.000000e+00> : vector<8x128xf32>
    %14 = tpu.matmul %13, %12, %cst_12 {dimension_numbers = #tpu.dot_dimension_numbers<[1], [0], [0], [1], [0, 0, 1, 1], [], []>} : vector<8x32xf32>, vector<32x128xf32>, vector<8x128xf32> -> vector<8x128xf32>
    %c0_13 = arith.constant 0 : index
    %c0_14 = arith.constant 0 : index
    %15 = vector.load %arg7[%c0_13, %c0_14] : memref<8x1xf32, #tpu.memory_space<vmem>>, vector<8x1xf32>
    %16 = vector.broadcast %15 : vector<8x1xf32> to vector<8x128xf32>
    %17 = arith.addf %14, %16 : vector<8x128xf32>
    %cst_15 = arith.constant 0.000000e+00 : f32
    %18 = vector.broadcast %cst_15 : f32 to vector<8x128xf32>
    %19 = arith.maximumf %17, %18 : vector<8x128xf32>
    %20 = math.absf %17 : vector<8x128xf32>
    %cst_16 = arith.constant 0.000000e+00 : f32
    %21 = vector.broadcast %cst_16 : f32 to vector<8x128xf32>
    %22 = arith.subf %21, %20 : vector<8x128xf32>
    %23 = math.exp %22 : vector<8x128xf32>
    %24 = math.log1p %23 : vector<8x128xf32>
    %25 = arith.addf %19, %24 : vector<8x128xf32>
    %c0_17 = arith.constant 0 : index
    %c0_18 = arith.constant 0 : index
    %26 = vector.load %arg8[%c0_17, %c0_18] : memref<8x1xf32, #tpu.memory_space<vmem>>, vector<8x1xf32>
    %27 = vector.broadcast %26 : vector<8x1xf32> to vector<8x128xf32>
    %28 = arith.mulf %27, %17 : vector<8x128xf32>
    %cst_19 = arith.constant 1.000000e+00 : f32
    %29 = vector.broadcast %cst_19 : f32 to vector<8x1xf32>
    %30 = arith.subf %29, %26 : vector<8x1xf32>
    %31 = vector.broadcast %30 : vector<8x1xf32> to vector<8x128xf32>
    %32 = arith.mulf %31, %25 : vector<8x128xf32>
    %33 = arith.addf %28, %32 : vector<8x128xf32>
    %c0_20 = arith.constant 0 : index
    %c0_21 = arith.constant 0 : index
    %34 = vector.load %arg9[%c0_20, %c0_21] : memref<8x128xf32, #tpu.memory_space<vmem>>, vector<8x128xf32>
    tpu.vector_store %arg9[%c0_20, %c0_21], %33 {strides = array<i32>} : memref<8x128xf32, #tpu.memory_space<vmem>>, vector<8x128xf32>,
    return
  }
  func.func @transform_0(%arg0: i32) -> (i32, i32) {
    %c0_i32 = arith.constant 0 : i32
    %c0_i32_0 = arith.constant 0 : i32
    return %arg0, %c0_i32 : i32, i32
  }
  func.func @transform_1(%arg0: i32) -> (i32, i32) {
    %c0_i32 = arith.constant 0 : i32
    %c0_i32_0 = arith.constant 0 : i32
    %c0_i32_1 = arith.constant 0 : i32
    return %c0_i32, %c0_i32_0 : i32, i32
  }
  func.func @transform_2(%arg0: i32) -> (i32, i32) {
    %c0_i32 = arith.constant 0 : i32
    %c0_i32_0 = arith.constant 0 : i32
    %c0_i32_1 = arith.constant 0 : i32
    return %c0_i32, %c0_i32_0 : i32, i32
  }
  func.func @transform_3(%arg0: i32) -> (i32, i32) {
    %c0_i32 = arith.constant 0 : i32
    %c0_i32_0 = arith.constant 0 : i32
    %c0_i32_1 = arith.constant 0 : i32
    return %c0_i32, %c0_i32_0 : i32, i32
  }
  func.func @transform_4(%arg0: i32) -> (i32, i32) {
    %c0_i32 = arith.constant 0 : i32
    %c0_i32_0 = arith.constant 0 : i32
    %c0_i32_1 = arith.constant 0 : i32
    return %c0_i32, %c0_i32_0 : i32, i32
  }
  func.func @transform_5(%arg0: i32) -> (i32, i32) {
    %c0_i32 = arith.constant 0 : i32
    %c0_i32_0 = arith.constant 0 : i32
    %c0_i32_1 = arith.constant 0 : i32
    return %c0_i32, %c0_i32_0 : i32, i32
  }
  func.func @transform_6(%arg0: i32) -> (i32, i32) {
    %c0_i32 = arith.constant 0 : i32
    %c0_i32_0 = arith.constant 0 : i32
    %c0_i32_1 = arith.constant 0 : i32
    return %c0_i32, %c0_i32_0 : i32, i32
  }
  func.func @transform_7(%arg0: i32) -> (i32, i32) {
    %c0_i32 = arith.constant 0 : i32
    %c0_i32_0 = arith.constant 0 : i32
    %c0_i32_1 = arith.constant 0 : i32
    return %c0_i32, %c0_i32_0 : i32, i32
  }
  func.func @transform_8(%arg0: i32) -> (i32, i32) {
    %c0_i32 = arith.constant 0 : i32
    %c0_i32_0 = arith.constant 0 : i32
    return %c0_i32, %arg0 : i32, i32
  }
}

</mosaic_0001>

<llo_original>
// kernel: tpu_custom_call.1
$region0: #{tpu_custom_call.1}
  #allocation0 [shape = 'u32[]', space=smem, size = 0x4, offset = 0x4, fixed_abs, tag = 'smem constant byte address 0x4 - core index']
  #allocation1 [shape = 'u32[144,128]{1,0:T(1,128)}', space=vmem, size = 0x12000, scoped, tag = 'internal scratch']
  %s0 = inlined_call_operand.vmem [shape: f32[128,18], index: 0, kind: input, shape index: {}]
  %s1 = inlined_call_operand.vmem [shape: f32[16,18], index: 1, kind: input, shape index: {}]
  %s2 = inlined_call_operand.vmem [shape: f32[16,1], index: 2, kind: input, shape index: {}]
  %s3 = inlined_call_operand.vmem [shape: f32[32,16], index: 3, kind: input, shape index: {}]
  %s4 = inlined_call_operand.vmem [shape: f32[32,1], index: 4, kind: input, shape index: {}]
  %s5 = inlined_call_operand.vmem [shape: f32[8,32], index: 5, kind: input, shape index: {}]
  %s6 = inlined_call_operand.vmem [shape: f32[8,1], index: 6, kind: input, shape index: {}]
  %s7 = inlined_call_operand.vmem [shape: f32[8,1], index: 7, kind: input, shape index: {}]
  %s8 = inlined_call_operand.hbm [shape: f32[8,128], index: 8, kind: output, shape index: {}]
  %s9 = sld [smem:[#allocation0]]
  $region42: #{tpu_custom_call.1} parent=0
    _
  %s11 = ssub.s32 1, %s9
  %s12 = scalar_select 0, %s11, %s9
  $region1: #{tpu_custom_call.1} parent=0
    #allocation2 [shape = 'u8[4096]{0}', space=vmem, size = 0x1000, scoped, tag = 'output window, operand 0, single buffered']
    #allocation3 [shape = 's32[1]{0}', space=sflag, size = 0x4, scoped, tag = 'scoped memory for tpu_custom_call.1']
    %13 = vsyncpa [#allocation3], 0
    // Predicated region
    $region2: #{tpu_custom_call.1} parent=1 // pred_check
      _
    $region3: #{tpu_custom_call.1} parent=1 // pred_check_branch
      %15 = sbr.rel (0) target = $region5
    $region4: #{tpu_custom_call.1} parent=1 // pred_region
      _
    $region5: #{tpu_custom_call.1} parent=1 // pred_fallthru
      _
    // Predicated region
    $region6: #{tpu_custom_call.1} parent=1 // pred_check
      _
    $region7: #{tpu_custom_call.1} parent=1 // pred_check_branch
      %17 = sbr.rel (0) target = $region9
    $region8: #{tpu_custom_call.1} parent=1 // pred_region
      _
    $region9: #{tpu_custom_call.1} parent=1 // pred_fallthru
      _
    // Predicated region
    $region10: #{tpu_custom_call.1} parent=1 // pred_check
      _
    $region11: #{tpu_custom_call.1} parent=1 // pred_check_branch
      %19 = sbr.rel (0) target = $region13
    $region12: #{tpu_custom_call.1} parent=1 // pred_region
      _
    $region13: #{tpu_custom_call.1} parent=1 // pred_fallthru
      _
    // Predicated region
    $region14: #{tpu_custom_call.1} parent=1 // pred_check
      _
    $region15: #{tpu_custom_call.1} parent=1 // pred_check_branch
      %21 = sbr.rel (0) target = $region17
    $region16: #{tpu_custom_call.1} parent=1 // pred_region
      _
    $region17: #{tpu_custom_call.1} parent=1 // pred_fallthru
      _
    // Predicated region
    $region18: #{tpu_custom_call.1} parent=1 // pred_check
      _
    $region19: #{tpu_custom_call.1} parent=1 // pred_check_branch
      %23 = sbr.rel (0) target = $region21
    $region20: #{tpu_custom_call.1} parent=1 // pred_region
      _
    $region21: #{tpu_custom_call.1} parent=1 // pred_fallthru
      _
    // Predicated region
    $region22: #{tpu_custom_call.1} parent=1 // pred_check
      _
    $region23: #{tpu_custom_call.1} parent=1 // pred_check_branch
      %25 = sbr.rel (0) target = $region25
    $region24: #{tpu_custom_call.1} parent=1 // pred_region
      _
    $region25: #{tpu_custom_call.1} parent=1 // pred_fallthru
      _
    // Predicated region
    $region26: #{tpu_custom_call.1} parent=1 // pred_check
      _
    $region27: #{tpu_custom_call.1} parent=1 // pred_check_branch
      %27 = sbr.rel (0) target = $region29
    $region28: #{tpu_custom_call.1} parent=1 // pred_region
      _
    $region29: #{tpu_custom_call.1} parent=1 // pred_fallthru
      _
    // Predicated region
    $region30: #{tpu_custom_call.1} parent=1 // pred_check
      _
    $region31: #{tpu_custom_call.1} parent=1 // pred_check_branch
      %29 = sbr.rel (0) target = $region33
    $region32: #{tpu_custom_call.1} parent=1 // pred_region
      _
    $region33: #{tpu_custom_call.1} parent=1 // pred_fallthru
      _
    %v30 = vld [vmem:[%s0] sm:$0xff]
    %v31 = vld [vmem:[%s0 + $0x8] sm:$0xff]
    %v32 = vld [vmem:[%s0 + $0x10] sm:$0xff]
    %v33 = vld [vmem:[%s0 + $0x18] sm:$0xff]
    %v34 = vld [vmem:[%s0 + $0x20] sm:$0xff]
    %v35 = vld [vmem:[%s0 + $0x28] sm:$0xff]
    %v36 = vld [vmem:[%s0 + $0x30] sm:$0xff]
    %v37 = vld [vmem:[%s0 + $0x38] sm:$0xff]
    %v38 = vld [vmem:[%s0 + $0x40] sm:$0xff]
    %v39 = vld [vmem:[%s0 + $0x48] sm:$0xff]
    %v40 = vld [vmem:[%s0 + $0x50] sm:$0xff]
    %v41 = vld [vmem:[%s0 + $0x58] sm:$0xff]
    %v42 = vld [vmem:[%s0 + $0x60] sm:$0xff]
    %v43 = vld [vmem:[%s0 + $0x68] sm:$0xff]
    %v44 = vld [vmem:[%s0 + $0x70] sm:$0xff]
    %v45 = vld [vmem:[%s0 + $0x78] sm:$0xff]
    %v46 = vld [vmem:[%s1] sm:$0xff]
    %v47 = vld [vmem:[%s1 + $0x8] sm:$0xff]
    %v48 = vld [vmem:[%s2] sm:$0xff]
    %v49 = vld [vmem:[%s2 + $0x8] sm:$0xff]
    %51 = vset.pattern.permute.xlu0 0
    %52 = vperm.xlu0 %51, %v48
    %v53 = vpop.permute.xlu0 %52
    %56 = vset.pattern.permute.xlu0 0
    %57 = vperm.xlu0 %56, %v49
    %v58 = vpop.permute.xlu0 %57
    %vm60 = vcmask 146432
    %v62 = vsel %vm60, %v46, 0
    %v65 = vsel %vm60, %v47, 0
    %v68 = vsel %vm60, %v30, 0
    %v71 = vsel %vm60, %v31, 0
    %v74 = vsel %vm60, %v32, 0
    %v77 = vsel %vm60, %v33, 0
    %v80 = vsel %vm60, %v34, 0
    %v83 = vsel %vm60, %v35, 0
    %v86 = vsel %vm60, %v36, 0
    %v89 = vsel %vm60, %v37, 0
    %v92 = vsel %vm60, %v38, 0
    %v95 = vsel %vm60, %v39, 0
    %v98 = vsel %vm60, %v40, 0
    %v101 = vsel %vm60, %v41, 0
    %v104 = vsel %vm60, %v42, 0
    %v107 = vsel %vm60, %v43, 0
    %v110 = vsel %vm60, %v44, 0
    %v113 = vsel %vm60, %v45, 0
    %115 = vmatprep.subr.mxu0 0.0
    %116 = vmatpush1.xpose.msra.mxu0 %v113
    %117 = vmatprep.subr.mxu0 0.0
    %118 = vmatpush1.xpose.msra.mxu0 %v110
    %119 = vmatprep.subr.mxu0 0.0
    %120 = vmatpush1.xpose.msra.mxu0 %v107
    %121 = vmatprep.subr.mxu0 0.0
    %122 = vmatpush1.xpose.msra.mxu0 %v104
    %123 = vmatprep.subr.mxu0 0.0
    %124 = vmatpush1.xpose.msra.mxu0 %v101
    %125 = vmatprep.subr.mxu0 0.0
    %126 = vmatpush1.xpose.msra.mxu0 %v98
    %127 = vmatprep.subr.mxu0 0.0
    %128 = vmatpush1.xpose.msra.mxu0 %v95
    %129 = vmatprep.subr.mxu0 0.0
    %130 = vmatpush1.xpose.msra.mxu0 %v92
    %131 = vmatprep.subr.mxu0 0.0
    %132 = vmatpush1.xpose.msra.mxu0 %v89
    %133 = vmatprep.subr.mxu0 0.0
    %134 = vmatpush1.xpose.msra.mxu0 %v86
    %135 = vmatprep.subr.mxu0 0.0
    %136 = vmatpush1.xpose.msra.mxu0 %v83
    %137 = vmatprep.subr.mxu0 0.0
    %138 = vmatpush1.xpose.msra.mxu0 %v80
    %139 = vmatprep.subr.mxu0 0.0
    %140 = vmatpush1.xpose.msra.mxu0 %v77
    %141 = vmatprep.subr.mxu0 0.0
    %142 = vmatpush1.xpose.msra.mxu0 %v74
    %143 = vmatprep.subr.mxu0 0.0
    %144 = vmatpush1.xpose.msra.mxu0 %v71
    %145 = vmatprep.subr.mxu0 0.0
    %146 = vmatpush1.xpose.msra.mxu0 %v68
    %147 = vmatprep.subr.mxu0 0.0
    %148 = vmatpush2.xpose.msra.mxu0 0.0
    %149 = vmatprep.subr.mxu0 0.0
    %150 = vmatpush2.xpose.msra.mxu0 0.0
    %151 = vmatprep.subr.mxu0 0.0
    %152 = vmatpush2.xpose.msra.mxu0 0.0
    %153 = vmatprep.subr.mxu0 0.0
    %154 = vmatpush2.xpose.msra.mxu0 0.0
    %155 = vmatprep.subr.mxu0 0.0
    %156 = vmatpush2.xpose.msra.mxu0 0.0
    %157 = vmatprep.subr.mxu0 0.0
    %158 = vmatpush2.xpose.msra.mxu0 0.0
    %159 = vmatprep.subr.mxu0 0.0
    %160 = vmatpush2.xpose.msra.mxu0 0.0
    %161 = vmatprep.subr.mxu0 0.0
    %162 = vmatpush2.xpose.msra.mxu0 0.0
    %163 = vmatprep.subr.mxu0 0.0
    %164 = vmatpush2.xpose.msra.mxu0 0.0
    %165 = vmatprep.subr.mxu0 0.0
    %166 = vmatpush2.xpose.msra.mxu0 0.0
    %167 = vmatprep.subr.mxu0 0.0
    %168 = vmatpush2.xpose.msra.mxu0 0.0
    %169 = vmatprep.subr.mxu0 0.0
    %170 = vmatpush2.xpose.msra.mxu0 0.0
    %171 = vmatprep.subr.mxu0 0.0
    %172 = vmatpush2.xpose.msra.mxu0 0.0
    %173 = vmatprep.subr.mxu0 0.0
    %174 = vmatpush2.xpose.msra.mxu0 0.0
    %175 = vmatprep.subr.mxu0 0.0
    %176 = vmatpush2.xpose.msra.mxu0 0.0
    %177 = vmatprep.subr.mxu0 0.0
    %178 = vmatpush2.xpose.msra.mxu0 0.0
    %179 = vmatprep.mubr.f32.mxu0 0.0
    %180 = vmatmul.mubr.f32.gmra.mxu0 %v62
    %v181 = vpop.f32.mrf.mxu0
    %v182 = vadd.f32 %v53, %v181
    %v183 = vpop.f32.mrf.mxu0
    %184 = vmatprep.mubr.f32.mxu0 0.0
    %185 = vmatmul.mubr.f32.gmra.mxu0 %v65
    %v186 = vpop.f32.mrf.mxu0
    %v187 = vadd.f32 %v58, %v186
    %v188 = vpop.f32.mrf.mxu0
    %189 = vdwg.mxu0
    %v190 = vtanh.pop %v182
    %v191 = vtanh.pop %v187
    %v192 = vld [vmem:[%s3] sm:$0xff]
    %v193 = vld [vmem:[%s3 + $0x8] sm:$0xff]
    %v194 = vld [vmem:[%s3 + $0x10] sm:$0xff]
    %v195 = vld [vmem:[%s3 + $0x18] sm:$0xff]
    %v196 = vld [vmem:[%s4] sm:$0xff]
    %v197 = vld [vmem:[%s4 + $0x8] sm:$0xff]
    %v198 = vld [vmem:[%s4 + $0x10] sm:$0xff]
    %v199 = vld [vmem:[%s4 + $0x18] sm:$0xff]
    %201 = vset.pattern.permute.xlu0 0
    %202 = vperm.xlu0 %201, %v196
    %v203 = vpop.permute.xlu0 %202
    %206 = vset.pattern.permute.xlu0 0
    %207 = vperm.xlu0 %206, %v197
    %v208 = vpop.permute.xlu0 %207
    %211 = vset.pattern.permute.xlu0 0
    %212 = vperm.xlu0 %211, %v198
    %v213 = vpop.permute.xlu0 %212
    %216 = vset.pattern.permute.xlu0 0
    %217 = vperm.xlu0 %216, %v199
    %v218 = vpop.permute.xlu0 %217
    %vm220 = vcmask 130048
    %v222 = vsel %vm220, %v192, 0
    %v225 = vsel %vm220, %v193, 0
    %v228 = vsel %vm220, %v194, 0
    %v231 = vsel %vm220, %v195, 0
    %233 = vmatprep.subr.mxu0 0.0
    %234 = vmatpush1.msra.mxu0 0.0
    %235 = vmatprep.subr.mxu0 0.0
    %236 = vmatpush1.msra.mxu0 0.0
    %237 = vmatprep.subr.mxu0 0.0
    %238 = vmatpush1.msra.mxu0 0.0
    %239 = vmatprep.subr.mxu0 0.0
    %240 = vmatpush1.msra.mxu0 0.0
    %241 = vmatprep.subr.mxu0 0.0
    %242 = vmatpush1.msra.mxu0 0.0
    %243 = vmatprep.subr.mxu0 0.0
    %244 = vmatpush1.msra.mxu0 0.0
    %245 = vmatprep.subr.mxu0 0.0
    %246 = vmatpush1.msra.mxu0 0.0
    %247 = vmatprep.subr.mxu0 0.0
    %248 = vmatpush1.msra.mxu0 0.0
    %249 = vmatprep.subr.mxu0 0.0
    %250 = vmatpush1.msra.mxu0 0.0
    %251 = vmatprep.subr.mxu0 0.0
    %252 = vmatpush1.msra.mxu0 0.0
    %253 = vmatprep.subr.mxu0 0.0
    %254 = vmatpush1.msra.mxu0 0.0
    %255 = vmatprep.subr.mxu0 0.0
    %256 = vmatpush1.msra.mxu0 0.0
    %257 = vmatprep.subr.mxu0 0.0
    %258 = vmatpush1.msra.mxu0 0.0
    %259 = vmatprep.subr.mxu0 0.0
    %260 = vmatpush1.msra.mxu0 0.0
    %261 = vmatprep.subr.mxu0 0.0
    %262 = vmatpush1.msra.mxu0 %v191
    %263 = vmatprep.subr.mxu0 0.0
    %264 = vmatpush1.msra.mxu0 %v190
    %265 = vmatprep.subr.mxu0 0.0
    %266 = vmatpush2.msra.mxu0 0.0
    %267 = vmatprep.subr.mxu0 0.0
    %268 = vmatpush2.msra.mxu0 0.0
    %269 = vmatprep.subr.mxu0 0.0
    %270 = vmatpush2.msra.mxu0 0.0
    %271 = vmatprep.subr.mxu0 0.0
    %272 = vmatpush2.msra.mxu0 0.0
    %273 = vmatprep.subr.mxu0 0.0
    %274 = vmatpush2.msra.mxu0 0.0
    %275 = vmatprep.subr.mxu0 0.0
    %276 = vmatpush2.msra.mxu0 0.0
    %277 = vmatprep.subr.mxu0 0.0
    %278 = vmatpush2.msra.mxu0 0.0
    %279 = vmatprep.subr.mxu0 0.0
    %280 = vmatpush2.msra.mxu0 0.0
    %281 = vmatprep.subr.mxu0 0.0
    %282 = vmatpush2.msra.mxu0 0.0
    %283 = vmatprep.subr.mxu0 0.0
    %284 = vmatpush2.msra.mxu0 0.0
    %285 = vmatprep.subr.mxu0 0.0
    %286 = vmatpush2.msra.mxu0 0.0
    %287 = vmatprep.subr.mxu0 0.0
    %288 = vmatpush2.msra.mxu0 0.0
    %289 = vmatprep.subr.mxu0 0.0
    %290 = vmatpush2.msra.mxu0 0.0
    %291 = vmatprep.subr.mxu0 0.0
    %292 = vmatpush2.msra.mxu0 0.0
    %293 = vmatprep.subr.mxu0 0.0
    %294 = vmatpush2.msra.mxu0 0.0
    %295 = vmatprep.subr.mxu0 0.0
    %296 = vmatpush2.msra.mxu0 0.0
    %297 = vmatprep.mubr.f32.mxu0 0.0
    %298 = vmatmul.mubr.f32.gmra.mxu0 %v222
    %v299 = vpop.f32.mrf.mxu0
    %v300 = vadd.f32 %v203, %v299
    %v301 = vpop.f32.mrf.mxu0
    %302 = vmatprep.mubr.f32.mxu0 0.0
    %303 = vmatmul.mubr.f32.gmra.mxu0 %v225
    %v304 = vpop.f32.mrf.mxu0
    %v305 = vadd.f32 %v208, %v304
    %v306 = vpop.f32.mrf.mxu0
    %307 = vmatprep.mubr.f32.mxu0 0.0
    %308 = vmatmul.mubr.f32.gmra.mxu0 %v228
    %v309 = vpop.f32.mrf.mxu0
    %v310 = vadd.f32 %v213, %v309
    %v311 = vpop.f32.mrf.mxu0
    %312 = vmatprep.mubr.f32.mxu0 0.0
    %313 = vmatmul.mubr.f32.gmra.mxu0 %v231
    %v314 = vpop.f32.mrf.mxu0
    %v315 = vadd.f32 %v218, %v314
    %v316 = vpop.f32.mrf.mxu0
    %317 = vdwg.mxu0
    %v318 = vtanh.pop %v300
    %v319 = vtanh.pop %v305
    %v320 = vtanh.pop %v310
    %v321 = vtanh.pop %v315
    %v322 = vld [vmem:[%s5] sm:$0xff]
    %v323 = vld [vmem:[%s6] sm:$0xff]
    %325 = vset.pattern.permute.xlu0 0
    %326 = vperm.xlu0 %325, %v323
    %v327 = vpop.permute.xlu0 %326
    %vm329 = vcmask 261120
    %v331 = vsel %vm329, %v322, 0
    %333 = vmatprep.subr.mxu0 0.0
    %334 = vmatpush1.msra.mxu0 0.0
    %335 = vmatprep.subr.mxu0 0.0
    %336 = vmatpush1.msra.mxu0 0.0
    %337 = vmatprep.subr.mxu0 0.0
    %338 = vmatpush1.msra.mxu0 0.0
    %339 = vmatprep.subr.mxu0 0.0
    %340 = vmatpush1.msra.mxu0 0.0
    %341 = vmatprep.subr.mxu0 0.0
    %342 = vmatpush1.msra.mxu0 0.0
    %343 = vmatprep.subr.mxu0 0.0
    %344 = vmatpush1.msra.mxu0 0.0
    %345 = vmatprep.subr.mxu0 0.0
    %346 = vmatpush1.msra.mxu0 0.0
    %347 = vmatprep.subr.mxu0 0.0
    %348 = vmatpush1.msra.mxu0 0.0
    %349 = vmatprep.subr.mxu0 0.0
    %350 = vmatpush1.msra.mxu0 0.0
    %351 = vmatprep.subr.mxu0 0.0
    %352 = vmatpush1.msra.mxu0 0.0
    %353 = vmatprep.subr.mxu0 0.0
    %354 = vmatpush1.msra.mxu0 0.0
    %355 = vmatprep.subr.mxu0 0.0
    %356 = vmatpush1.msra.mxu0 0.0
    %357 = vmatprep.subr.mxu0 0.0
    %358 = vmatpush1.msra.mxu0 %v321
    %359 = vmatprep.subr.mxu0 0.0
    %360 = vmatpush1.msra.mxu0 %v320
    %361 = vmatprep.subr.mxu0 0.0
    %362 = vmatpush1.msra.mxu0 %v319
    %363 = vmatprep.subr.mxu0 0.0
    %364 = vmatpush1.msra.mxu0 %v318
    %365 = vmatprep.subr.mxu0 0.0
    %366 = vmatpush2.msra.mxu0 0.0
    %367 = vmatprep.subr.mxu0 0.0
    %368 = vmatpush2.msra.mxu0 0.0
    %369 = vmatprep.subr.mxu0 0.0
    %370 = vmatpush2.msra.mxu0 0.0
    %371 = vmatprep.subr.mxu0 0.0
    %372 = vmatpush2.msra.mxu0 0.0
    %373 = vmatprep.subr.mxu0 0.0
    %374 = vmatpush2.msra.mxu0 0.0
    %375 = vmatprep.subr.mxu0 0.0
    %376 = vmatpush2.msra.mxu0 0.0
    %377 = vmatprep.subr.mxu0 0.0
    %378 = vmatpush2.msra.mxu0 0.0
    %379 = vmatprep.subr.mxu0 0.0
    %380 = vmatpush2.msra.mxu0 0.0
    %381 = vmatprep.subr.mxu0 0.0
    %382 = vmatpush2.msra.mxu0 0.0
    %383 = vmatprep.subr.mxu0 0.0
    %384 = vmatpush2.msra.mxu0 0.0
    %385 = vmatprep.subr.mxu0 0.0
    %386 = vmatpush2.msra.mxu0 0.0
    %387 = vmatprep.subr.mxu0 0.0
    %388 = vmatpush2.msra.mxu0 0.0
    %389 = vmatprep.subr.mxu0 0.0
    %390 = vmatpush2.msra.mxu0 0.0
    %391 = vmatprep.subr.mxu0 0.0
    %392 = vmatpush2.msra.mxu0 0.0
    %393 = vmatprep.subr.mxu0 0.0
    %394 = vmatpush2.msra.mxu0 0.0
    %395 = vmatprep.subr.mxu0 0.0
    %396 = vmatpush2.msra.mxu0 0.0
    %397 = vmatprep.mubr.f32.mxu0 0.0
    %398 = vmatmul.mubr.f32.gmra.mxu0 %v331
    %v399 = vpop.f32.mrf.mxu0
    %v400 = vadd.f32 %v327, %v399
    %v401 = vpop.f32.mrf.mxu0
    %402 = vdwg.mxu0
    %v403 = vmax.f32 %v400, 0.0
    %v404 = vand.u32 2147483647, %v400
    %v405 = vsub.f32 0.0, %v404
    %v406 = vmul.f32 %v405, 1.442695
    %v407 = vpow.pop %v406
    %v408 = vadd.f32 %v407, 1.0
    %v409 = vlog2.pop %v408
    %v410 = vmul.f32 %v409, 0.6931472
    %v411 = vmul.f32 -0.5, %v407
    %v412 = vadd.f32 %v411, 1.0
    %v413 = vmul.f32 %v412, %v407
    %v414 = vand.u32 2147483647, %v407
    %vm415 = vcmp.lt.f32.partialorder %v414, 0.0004427343
    %v416 = vsel %vm415, %v413, %v410
    %v417 = vadd.f32 %v403, %v416
    %v418 = vld [vmem:[%s7] sm:$0xff]
    %420 = vset.pattern.permute.xlu0 0
    %421 = vperm.xlu0 %420, %v418
    %v422 = vpop.permute.xlu0 %421
    %v424 = vmul.f32 %v422, %v400
    %v425 = vsub.f32 1.0, %v418
    %427 = vset.pattern.permute.xlu0 0
    %428 = vperm.xlu0 %427, %v425
    %v429 = vpop.permute.xlu0 %428
    %v431 = vmul.f32 %v429, %v417
    %v432 = vadd.f32 %v424, %v431
    %433 = vst [vmem:[#allocation2] sm:$0xff] %v432
    // Predicated region
    $region34: #{tpu_custom_call.1} parent=1 // pred_check
      _
    $region35: #{tpu_custom_call.1} parent=1 // pred_check_branch
      %435 = sbr.rel (0) target = $region37
    $region36: #{tpu_custom_call.1} parent=1 // pred_region
      %s437 = ssub.s32 128, 128
      %438 = vsyncadd [#allocation3], %s437
      %s440 = sshll.u32 [#allocation2], 4
      %s441 = int_to_ptr.vmem [resolvable:$true] %s440
      %443 = dma.vmem_to_hbm [thread:$0]  %s441, 128, %s8, [#allocation3]
    $region37: #{tpu_custom_call.1} parent=1 // pred_fallthru
      _
    // Predicated region
    $region38: #{tpu_custom_call.1} parent=1 // pred_check
      _
    $region39: #{tpu_custom_call.1} parent=1 // pred_check_branch
      %445 = sbr.rel (0) target = $region41
    $region40: #{tpu_custom_call.1} parent=1 // pred_region
      %446 = dma.done [#allocation3], 128
    $region41: #{tpu_custom_call.1} parent=1 // pred_fallthru
      _
    %447 = vsyncpa [#allocation3], 1

</llo_original>
